<compile_context>
chip_gen: v5e
topology: v5e:2x2
jax: 0.10.0
libtpu: 0.0.40
codegen_flags: <defaults>
</compile_context>

<pallas_src>
import jax
import jax.numpy as jnp
from jax.experimental import pallas as pl
from jax.experimental.pallas import tpu as pltpu


def _round_up(x: int, m: int) -> int:
    return ((x + m - 1) // m) * m


def _linear_kernel(x_ref, w_ref, b_ref, o_ref, acc_ref):
    # x_ref: (TB, TK) VMEM tile, w_ref: (1, TK) VMEM, b_ref: (1, 1) SMEM,
    # o_ref: (TB, 1), acc_ref: (TB, 1) f32 VMEM scratch (persists across K).
    k = pl.program_id(1)

    @pl.when(k == 0)
    def _():
        acc_ref[...] = jnp.zeros_like(acc_ref)

    x = x_ref[...].astype(jnp.float32)           # (TB, TK)
    w = w_ref[...].astype(jnp.float32)           # (1, TK) -> broadcasts over rows
    acc_ref[...] += jnp.sum(x * w, axis=-1, keepdims=True)  # VPU mul + XLU reduce

    @pl.when(k == pl.num_programs(1) - 1)
    def _():
        o_ref[...] = (acc_ref[...] + b_ref[0, 0]).astype(o_ref.dtype)


def _choose_tiles(batch: int, n_feature: int, itemsize: int,
                  *, vmem_tile_bytes: int = 8 * 1024 * 1024):
    """Pick (tb, tk) so one x tile <= vmem_tile_bytes (double-buffered by Pallas)."""
    tb = min(1024, _round_up(batch, 8))
    tb = max(8, (tb // 8) * 8)
    if tb * n_feature * itemsize <= vmem_tile_bytes:
        return tb, n_feature
    # Shrink the batch tile first (keeps the whole reduction in one K step).
    while tb > 256 and tb * n_feature * itemsize > vmem_tile_bytes:
        tb //= 2
    if tb * n_feature * itemsize <= vmem_tile_bytes:
        return tb, n_feature
    # Very large feature dim: tile the reduction axis (multiple of 128 lanes).
    tk = max(128, (vmem_tile_bytes // (tb * itemsize)) // 128 * 128)
    return tb, tk


def linear_net_forward(x, w, b):
    """y = x @ w.T + b  (LinearNet.forward equivalent)."""
    batch, n_feature = x.shape
    w2d = w.reshape(1, n_feature).astype(x.dtype)
    b2d = b.reshape(1, 1).astype(jnp.float32)

    itemsize = jnp.dtype(x.dtype).itemsize
    tb, tk = _choose_tiles(batch, n_feature, itemsize)

    # Pad batch to a multiple of tb (padded rows are sliced off afterwards).
    padded_b = _round_up(batch, tb)
    # Pad features to a multiple of tk only if the K axis is actually tiled;
    # zero padding contributes nothing to the reduction.
    padded_f = n_feature if tk == n_feature else _round_up(n_feature, tk)
    if padded_b != batch or padded_f != n_feature:
        x = jnp.pad(x, ((0, padded_b - batch), (0, padded_f - n_feature)))
    if padded_f != n_feature:
        w2d = jnp.pad(w2d, ((0, 0), (0, padded_f - n_feature)))

    grid = (padded_b // tb, padded_f // tk)

    cost = pl.CostEstimate(
        flops=2 * batch * n_feature,
        transcendentals=0,
        bytes_accessed=(batch * n_feature + n_feature + batch + 1) * itemsize,
    )

    out = pl.pallas_call(
        _linear_kernel,
        out_shape=jax.ShapeDtypeStruct((padded_b, 1), x.dtype),
        grid_spec=pltpu.PrefetchScalarGridSpec(
            num_scalar_prefetch=0,
            grid=grid,
            in_specs=[
                # x: one (batch, feature) tile per grid step (pipelined).
                pl.BlockSpec((tb, tk), lambda i, k: (i, k)),
                # w: one feature slice, revisited across batch tiles.
                pl.BlockSpec((1, tk), lambda i, k: (0, k)),
                # b: single scalar in SMEM.
                pl.BlockSpec(memory_space=pltpu.MemorySpace.SMEM),
            ],
            out_specs=pl.BlockSpec((tb, 1), lambda i, k: (i, 0)),
            scratch_shapes=[pltpu.VMEM((tb, 1), jnp.float32)],
        ),
        compiler_params=pltpu.CompilerParams(
            dimension_semantics=("parallel", "arbitrary"),
        ),
        cost_estimate=cost,
    )(x, w2d, b2d)

    return out[:batch]


if __name__ == "__main__":
    key = jax.random.PRNGKey(0)
    kx, kw, kb, kx2 = jax.random.split(key, 4)

    # Small shapes consistent with LinearNet: batch=8, n_feature=4.
    batch, n_feature = 8, 4

    # Deterministic parameter init mimicking nn.Linear default:
    # uniform(-1/sqrt(in_features), 1/sqrt(in_features)).
    bound = 1.0 / jnp.sqrt(jnp.float32(n_feature))
    w = jax.random.uniform(kw, (1, n_feature), jnp.float32, -bound, bound)
    b = jax.random.uniform(kb, (1,), jnp.float32, -bound, bound)
    x = jax.random.normal(kx, (batch, n_feature), jnp.float32)

    y = jax.block_until_ready(linear_net_forward(x, w, b))
    y_ref = x @ w.T + b.reshape(1, 1)
    assert y.shape == (batch, 1)
    assert jnp.allclose(y, y_ref, atol=1e-5, rtol=1e-5)

    # Second check exercising the batch-padding / tail path.
    batch2, n_feature2 = 300, 96
    bound2 = 1.0 / jnp.sqrt(jnp.float32(n_feature2))
    w2 = jax.random.uniform(kw, (1, n_feature2), jnp.float32, -bound2, bound2)
    b2 = jax.random.uniform(kb, (1,), jnp.float32, -bound2, bound2)
    x2 = jax.random.normal(kx2, (batch2, n_feature2), jnp.float32)

    y2 = jax.block_until_ready(linear_net_forward(x2, w2, b2))
    y2_ref = x2 @ w2.T + b2.reshape(1, 1)
    assert y2.shape == (batch2, 1)
    assert jnp.allclose(y2, y2_ref, atol=1e-4, rtol=1e-4)

    print("KERNEL_OK")
</pallas_src>

<mosaic_0001>
module attributes {stable_mosaic.version = 11 : i64} {
  func.func @_linear_kernel(%arg0: i32, %arg1: i32, %arg2: memref<8x4xf32, #tpu.memory_space<vmem>>, %arg3: memref<1x4xf32, #tpu.memory_space<vmem>>, %arg4: memref<1x1xf32, #tpu.memory_space<smem>>, %arg5: memref<8x1xf32, #tpu.memory_space<vmem>>, %arg6: memref<8x1xf32, #tpu.memory_space<vmem>>) attributes {dimension_semantics = [#tpu.dimension_semantics<parallel>, #tpu.dimension_semantics<arbitrary>], iteration_bounds = array<i64: 1, 1>, scalar_prefetch = 0 : i64, scratch_operands = 1 : i64, tpu.core_type = #tpu.core_type<tc>, window_params = [{transform_indices = @transform_0, window_bounds = array<i64: 8, 4>}, {transform_indices = @transform_1, window_bounds = array<i64: 1, 4>}, {transform_indices = @transform_2, window_bounds = array<i64: 1, 1>}, {transform_indices = @transform_3, window_bounds = array<i64: 8, 1>}]} {
    %c0_i32 = arith.constant 0 : i32
    %0 = arith.cmpi eq, %arg1, %c0_i32 : i32
    %1 = arith.extui %0 : i1 to i32
    %c0_i32_0 = arith.constant 0 : i32
    %2 = arith.cmpi ne, %1, %c0_i32_0 : i32
    scf.if %2 {
      %cst_10 = arith.constant 0.000000e+00 : f32
      %15 = vector.broadcast %cst_10 : f32 to vector<8x1xf32>
      %c0_11 = arith.constant 0 : index
      %c0_12 = arith.constant 0 : index
      %16 = vector.load %arg6[%c0_11, %c0_12] : memref<8x1xf32, #tpu.memory_space<vmem>>, vector<8x1xf32>
      tpu.vector_store %arg6[%c0_11, %c0_12], %15 {strides = array<i32>} : memref<8x1xf32, #tpu.memory_space<vmem>>, vector<8x1xf32>,
    } else {
    }
    %c0 = arith.constant 0 : index
    %c0_1 = arith.constant 0 : index
    %3 = vector.load %arg2[%c0, %c0_1] : memref<8x4xf32, #tpu.memory_space<vmem>>, vector<8x4xf32>
    %c0_2 = arith.constant 0 : index
    %c0_3 = arith.constant 0 : index
    %4 = vector.load %arg3[%c0_2, %c0_3] : memref<1x4xf32, #tpu.memory_space<vmem>>, vector<1x4xf32>
    %c0_4 = arith.constant 0 : index
    %c0_5 = arith.constant 0 : index
    %5 = vector.load %arg6[%c0_4, %c0_5] : memref<8x1xf32, #tpu.memory_space<vmem>>, vector<8x1xf32>
    %6 = vector.broadcast %4 : vector<1x4xf32> to vector<8x4xf32>
    %7 = arith.mulf %3, %6 : vector<8x4xf32>
    %cst = arith.constant dense<0.000000e+00> : vector<8xf32>
    %8 = vector.multi_reduction <add>, %7, %cst [1] : vector<8x4xf32> to vector<8xf32>
    %9 = vector.shape_cast %8 : vector<8xf32> to vector<8x1xf32>
    %10 = arith.addf %5, %9 : vector<8x1xf32>
    %c0_6 = arith.constant 0 : index
    %c0_7 = arith.constant 0 : index
    %11 = vector.load %arg6[%c0_6, %c0_7] : memref<8x1xf32, #tpu.memory_space<vmem>>, vector<8x1xf32>
    tpu.vector_store %arg6[%c0_6, %c0_7], %10 {strides = array<i32>} : memref<8x1xf32, #tpu.memory_space<vmem>>, vector<8x1xf32>,
    %c0_i32_8 = arith.constant 0 : i32
    %12 = arith.cmpi eq, %arg1, %c0_i32_8 : i32
    %13 = arith.extui %12 : i1 to i32
    %c0_i32_9 = arith.constant 0 : i32
    %14 = arith.cmpi ne, %13, %c0_i32_9 : i32
    scf.if %14 {
      %c0_10 = arith.constant 0 : index
      %c0_11 = arith.constant 0 : index
      %15 = vector.load %arg6[%c0_10, %c0_11] : memref<8x1xf32, #tpu.memory_space<vmem>>, vector<8x1xf32>
      %c0_12 = arith.constant 0 : index
      %c0_13 = arith.constant 0 : index
      %16 = memref.load %arg4[%c0_12, %c0_13] : memref<1x1xf32, #tpu.memory_space<smem>>
      %17 = vector.broadcast %16 : f32 to vector<8x1xf32>
      %18 = arith.addf %15, %17 : vector<8x1xf32>
      %c0_14 = arith.constant 0 : index
      %c0_15 = arith.constant 0 : index
      %19 = vector.load %arg5[%c0_14, %c0_15] : memref<8x1xf32, #tpu.memory_space<vmem>>, vector<8x1xf32>
      tpu.vector_store %arg5[%c0_14, %c0_15], %18 {strides = array<i32>} : memref<8x1xf32, #tpu.memory_space<vmem>>, vector<8x1xf32>,
    } else {
    }
    return
  }
  func.func @transform_0(%arg0: i32, %arg1: i32) -> (i32, i32) {
    %c0_i32 = arith.constant 0 : i32
    return %arg0, %arg1 : i32, i32
  }
  func.func @transform_1(%arg0: i32, %arg1: i32) -> (i32, i32) {
    %c0_i32 = arith.constant 0 : i32
    %c0_i32_0 = arith.constant 0 : i32
    return %c0_i32, %arg1 : i32, i32
  }
  func.func @transform_2(%arg0: i32, %arg1: i32) -> (i32, i32) {
    %c0_i32 = arith.constant 0 : i32
    %c0_i32_0 = arith.constant 0 : i32
    %c0_i32_1 = arith.constant 0 : i32
    return %c0_i32, %c0_i32_0 : i32, i32
  }
  func.func @transform_3(%arg0: i32, %arg1: i32) -> (i32, i32) {
    %c0_i32 = arith.constant 0 : i32
    %c0_i32_0 = arith.constant 0 : i32
    return %arg0, %c0_i32 : i32, i32
  }
}

</mosaic_0001>

<llo_original>
// kernel: tpu_custom_call.1
$region0: #{tpu_custom_call.1}
  #allocation0 [shape = 'u32[]', space=smem, size = 0x4, offset = 0x4, fixed_abs, tag = 'smem constant byte address 0x4 - core index']
  #allocation1 [shape = 'u32[72,128]{1,0:T(1,128)}', space=vmem, size = 0x9000, scoped, tag = 'internal scratch']
  #allocation2 [shape = 'f32[8,1]{1,0:T(8,128)}', space=vmem, size = 0x1000, scoped, tag = 'scratch operand']
  #allocation3 [shape = 'f32[1,1]{1,0:T(1,128)S(6)}', space=smem, size = 0x200, scoped, tag = 'scoped memory for tpu_custom_call.1']
  %s0 = inlined_call_operand.vmem [shape: f32[8,4], index: 0, kind: input, shape index: {}]
  %s1 = inlined_call_operand.vmem [shape: f32[1,4], index: 1, kind: input, shape index: {}]
  %s2 = inlined_call_operand.<no memory space> [shape: f32[1,1], index: 2, kind: input, shape index: {}]
  %s3 = inlined_call_operand.vmem [shape: f32[8,1], index: 3, kind: output, shape index: {}]
  %s4 = sld [smem:[#allocation0]]
  $region30: #{tpu_custom_call.1} parent=0
    _
  %s6 = ssub.s32 1, %s4
  %s7 = scalar_select 0, %s6, %s4
  %8 = sst [smem:[#allocation3]] %s2
  // Predicated region
  $region2: #{tpu_custom_call.1} parent=0 // pred_check
    _
  $region3: #{tpu_custom_call.1} parent=0 // pred_check_branch
    %10 = sbr.rel (0) target = $region5
  $region4: #{tpu_custom_call.1} parent=0 // pred_region
    _
  $region5: #{tpu_custom_call.1} parent=0 // pred_fallthru
    _
  // Predicated region
  $region6: #{tpu_custom_call.1} parent=0 // pred_check
    _
  $region7: #{tpu_custom_call.1} parent=0 // pred_check_branch
    %12 = sbr.rel (0) target = $region9
  $region8: #{tpu_custom_call.1} parent=0 // pred_region
    _
  $region9: #{tpu_custom_call.1} parent=0 // pred_fallthru
    _
  // Predicated region
  $region10: #{tpu_custom_call.1} parent=0 // pred_check
    _
  $region11: #{tpu_custom_call.1} parent=0 // pred_check_branch
    %14 = sbr.rel (0) target = $region13
  $region12: #{tpu_custom_call.1} parent=0 // pred_region
    _
  $region13: #{tpu_custom_call.1} parent=0 // pred_fallthru
    _
  %p15 = scmp.eq.s32.totalorder 0, 0
  // Predicated region
  $region14: #{tpu_custom_call.1} parent=0 // pred_check
    %p16 = pneg %p15
  $region15: #{tpu_custom_call.1} parent=0 // pred_check_branch
    %18 = sbr.rel (%p16) target = $region17
  $region16: #{tpu_custom_call.1} parent=0 // pred_region
    %vm19 = vcmask 7168
    %20 = vst.msk [vmem:[#allocation2] sm:$0xff] %vm19, 0.0
  $region17: #{tpu_custom_call.1} parent=0 // pred_fallthru
    _
  %v21 = vld [vmem:[%s0] sm:$0xff]
  %v22 = vld [vmem:[%s1] sm:$0x1]
  %v23 = vld [vmem:[#allocation2] sm:$0xff]
  %v25 = vperm.slane %v22, 0
  %v27 = vmul.f32 %v21, %v25
  %vm28 = vcmask 31744
  %v29 = vsel %vm28, %v27, 0.0
  %30 = vadd.xlane.f32.xlu0 %v29
  %v31 = vpop.xlane.xlu0 %30
  %v32 = vadd.f32 %v23, %v31
  %vm33 = vcmask 7168
  %34 = vst.msk [vmem:[#allocation2] sm:$0xff] %vm33, %v32
  // Predicated region
  $region18: #{tpu_custom_call.1} parent=0 // pred_check
    %p35 = pneg %p15
  $region19: #{tpu_custom_call.1} parent=0 // pred_check_branch
    %37 = sbr.rel (%p35) target = $region21
  $region20: #{tpu_custom_call.1} parent=0 // pred_region
    %v38 = vld [vmem:[#allocation2] sm:$0xff]
    %s39 = sld [smem:[#allocation3]]
    %v40 = vstv %s39
    %v41 = vadd.f32 %v38, %v40
    %42 = vst.msk [vmem:[%s3] sm:$0xff] %vm33, %v41
  $region21: #{tpu_custom_call.1} parent=0 // pred_fallthru
    _
  // Predicated region
  $region22: #{tpu_custom_call.1} parent=0 // pred_check
    _
  $region23: #{tpu_custom_call.1} parent=0 // pred_check_branch
    %44 = sbr.rel (0) target = $region25
  $region24: #{tpu_custom_call.1} parent=0 // pred_region
    _
  $region25: #{tpu_custom_call.1} parent=0 // pred_fallthru
    _
  // Predicated region
  $region26: #{tpu_custom_call.1} parent=0 // pred_check
    _
  $region27: #{tpu_custom_call.1} parent=0 // pred_check_branch
    %46 = sbr.rel (0) target = $region29
  $region28: #{tpu_custom_call.1} parent=0 // pred_region
    _
  $region29: #{tpu_custom_call.1} parent=0 // pred_fallthru
    _

</llo_original>
